<compile_context>
chip_gen: v7x
topology: tpu7x:2x2x1
jax: 0.10.0
libtpu: 0.0.40
codegen_flags: <defaults>
</compile_context>

<pallas_src>
from functools import partial

import jax
import jax.numpy as jnp
from jax import lax
from jax.experimental import pallas as pl
from jax.experimental.pallas import tpu as pltpu


# ----------------------------------------------------------------------------
# Kernels
# ----------------------------------------------------------------------------
def _butterfly_group_sum(s, t_steps: int):
    """All-reduce across row-groups packed on the lane axis.

    s: (1, g*T) per-(group, time) sums.  After log2(g) circular rolls by
    T*2^j and adds, every lane k*T + t holds the total sum for time step t.
    """
    width = s.shape[-1]
    shift = t_steps
    while shift < width:
        s = s + pltpu.roll(s, shift=shift, axis=1)
        shift *= 2
    return s


def _mean_bcast_kernel(x_ref, o_ref, *, scale: float, grouped: bool, t_steps: int):
    # Single-pass: full row extent is resident; block = (R, tile_lanes).
    s = jnp.sum(x_ref[...], axis=0, dtype=jnp.float32, keepdims=True)  # (1, tL)
    if grouped:
        s = _butterfly_group_sum(s, t_steps)
    o_ref[...] = jnp.broadcast_to(s * scale, o_ref.shape).astype(o_ref.dtype)


def _partial_sum_kernel(x_ref, mean_ref, *, scale: float, grouped: bool,
                        t_steps: int, total_rows: int, block_rows: int):
    # Fallback pass 1: accumulate per-lane sums across row tiles (last grid
    # axis, "arbitrary"); finalize into means on the last row tile.
    r = pl.program_id(1)

    @pl.when(r == 0)
    def _init():
        mean_ref[...] = jnp.zeros_like(mean_ref)

    x = x_ref[...]
    if total_rows % block_rows != 0:
        # Mask rows of the (padded) last row tile so they do not pollute sums.
        row_ids = lax.broadcasted_iota(jnp.int32, x.shape, 0) + r * block_rows
        x = jnp.where(row_ids < total_rows, x, jnp.zeros_like(x))
    mean_ref[...] += jnp.sum(x, axis=0, dtype=jnp.float32, keepdims=True)

    @pl.when(r == pl.num_programs(1) - 1)
    def _finalize():
        s = mean_ref[...]
        if grouped:
            s = _butterfly_group_sum(s, t_steps)
        mean_ref[...] = s * scale


def _broadcast_kernel(mean_ref, o_ref):
    # Fallback pass 2: broadcast per-lane means over the row tile.
    o_ref[...] = jnp.broadcast_to(mean_ref[...], o_ref.shape).astype(o_ref.dtype)


# ----------------------------------------------------------------------------
# Planning helpers
# ----------------------------------------------------------------------------
def _default_block_budget_bytes() -> int:
    """Generation-aware per-block byte budget (double-buffered in+out must fit
    the default scoped-VMEM limit of each generation)."""
    kind = ""
    try:
        kind = jax.devices()[0].device_kind.lower()
    except Exception:
        pass
    if "v7" in kind:
        return 6 << 20    # ~3.2 TB/s HBM: bigger blocks amortize step overhead
    if "v6" in kind:
        return 4 << 20
    if "v5" in kind and ("lite" in kind or "v5e" in kind):
        return 2 << 20    # v5e: 16 MiB default scoped VMEM
    if "v5" in kind:
        return 4 << 20    # v5p
    return 2 << 20        # conservative default for unknown chips


def _choose_group(n_rows: int, t: int) -> int:
    """Largest power-of-two g dividing n_rows with g*t <= 512 (lane width)."""
    g = 1
    while n_rows % (g * 2) == 0 and (g * 2) * t <= 512:
        g *= 2
    return g


def _plan_tiles(rows: int, lanes: int, itemsize: int, budget: int, grouped: bool):
    """Return (tile_rows, tile_lanes, single_pass)."""
    if grouped or lanes <= 128:
        tl = lanes
    else:
        cand = (budget // max(rows * itemsize, 1)) // 128 * 128
        tl = lanes if cand >= lanes else max(128, cand)
    if rows * tl * itemsize <= budget:
        return rows, tl, True
    # Rows do not fit alongside a reasonable lane tile -> tile rows as well.
    if grouped:
        tl = lanes
    else:
        tl = lanes if lanes <= 512 else 512
    tr = (budget // (tl * itemsize)) // 8 * 8
    tr = max(8, tr)
    tr = min(tr, rows)
    return tr, tl, False


# ----------------------------------------------------------------------------
# Forward wrapper
# ----------------------------------------------------------------------------
def lambda_forward(x: jax.Array, *, block_budget_bytes: int = None) -> jax.Array:
    """Equivalent of Lambda(lambda s: ones_like(s) * s.mean()).forward(x).

    x: (B, C, T) -> (B, C, T), native NCT layout.
    """
    assert x.ndim == 3, "Lambda.forward expects (B, C, T)"
    B, C, T = x.shape
    n = B * C
    itemsize = jnp.dtype(x.dtype).itemsize
    budget = block_budget_bytes or _default_block_budget_bytes()

    # Layout: collapse (B, C) into rows; for small T, pack g rows per lane-row.
    g = _choose_group(n, T) if T < 128 else 1
    grouped = g > 1
    rows, lanes = n // g, g * T
    x2 = x.reshape(rows, lanes)                      # free (contiguous) reshape
    scale = 1.0 / float(n)

    tr, tl, single = _plan_tiles(rows, lanes, itemsize, budget, grouped)
    n_l = pl.cdiv(lanes, tl)

    if single:
        out2 = pl.pallas_call(
            partial(_mean_bcast_kernel, scale=scale, grouped=grouped, t_steps=T),
            out_shape=jax.ShapeDtypeStruct((rows, lanes), x.dtype),
            grid_spec=pltpu.PrefetchScalarGridSpec(
                num_scalar_prefetch=0,
                grid=(n_l,),
                in_specs=[pl.BlockSpec((rows, tl), lambda l: (0, l))],
                out_specs=pl.BlockSpec((rows, tl), lambda l: (0, l)),
            ),
            compiler_params=pltpu.CompilerParams(
                dimension_semantics=("parallel",)),
            cost_estimate=pl.CostEstimate(
                flops=int(n * T), transcendentals=0,
                bytes_accessed=int(2 * n * T * itemsize)),
        )(x2)
    else:
        # Large B*C fallback: (1) reduce rows into per-time means, (2) broadcast.
        n_r = pl.cdiv(rows, tr)
        means = pl.pallas_call(
            partial(_partial_sum_kernel, scale=scale, grouped=grouped,
                    t_steps=T, total_rows=rows, block_rows=tr),
            out_shape=jax.ShapeDtypeStruct((1, lanes), jnp.float32),
            grid_spec=pltpu.PrefetchScalarGridSpec(
                num_scalar_prefetch=0,
                grid=(n_l, n_r),
                in_specs=[pl.BlockSpec((tr, tl), lambda l, r: (r, l))],
                out_specs=pl.BlockSpec((1, tl), lambda l, r: (0, l)),
            ),
            compiler_params=pltpu.CompilerParams(
                dimension_semantics=("parallel", "arbitrary")),
            cost_estimate=pl.CostEstimate(
                flops=int(n * T), transcendentals=0,
                bytes_accessed=int(n * T * itemsize)),
        )(x2)
        out2 = pl.pallas_call(
            _broadcast_kernel,
            out_shape=jax.ShapeDtypeStruct((rows, lanes), x.dtype),
            grid_spec=pltpu.PrefetchScalarGridSpec(
                num_scalar_prefetch=0,
                grid=(n_l, n_r),
                in_specs=[pl.BlockSpec((1, tl), lambda l, r: (0, l))],
                out_specs=pl.BlockSpec((tr, tl), lambda l, r: (r, l)),
            ),
            compiler_params=pltpu.CompilerParams(
                dimension_semantics=("parallel", "parallel")),
            cost_estimate=pl.CostEstimate(
                flops=0, transcendentals=0,
                bytes_accessed=int(n * T * itemsize)),
        )(means)

    return out2.reshape(B, C, T)


def lambda_forward_ref(x: jax.Array) -> jax.Array:
    """Pure-JAX reference: per-time-step mean over (B, C), broadcast back."""
    m = jnp.mean(x.astype(jnp.float32), axis=(0, 1), keepdims=True)
    return jnp.broadcast_to(m, x.shape).astype(x.dtype)


# ----------------------------------------------------------------------------
# Demo / self-test
# ----------------------------------------------------------------------------
if __name__ == "__main__":
    key = jax.random.PRNGKey(0)
    k1, k2, k3, k4, k5 = jax.random.split(key, 5)

    def check(name, x, budget=None, tol=1e-5):
        out = jax.block_until_ready(lambda_forward(x, block_budget_bytes=budget))
        ref = lambda_forward_ref(x)
        assert out.shape == x.shape and out.dtype == x.dtype, (name, out.shape, out.dtype)
        err = float(jnp.max(jnp.abs(out.astype(jnp.float32) - ref.astype(jnp.float32))))
        assert err <= tol, f"{name}: max abs err {err} > {tol}"

    # 1) Module-sized input (B=2, C=4, T=16): grouped lane-dense path, f32.
    x1 = jax.random.normal(k1, (2, 4, 16), dtype=jnp.float32)
    check("grouped_f32", x1, tol=1e-5)

    # 2) Same shape in bf16 (f32 accumulation inside the reduction).
    x2 = jax.random.normal(k2, (2, 4, 16), dtype=jnp.float32).astype(jnp.bfloat16)
    check("grouped_bf16", x2, tol=2e-2)

    # 3) Long clip (T >= 128): plain lane-on-time single-pass path.
    x3 = jax.random.normal(k3, (2, 8, 256), dtype=jnp.float32)
    check("plain_single_pass", x3, tol=1e-5)

    # 4) Large-B*C guard (forced tiny budget): row-tiled reduce + broadcast,
    #    with a non-multiple-of-8 row count to exercise the row mask.
    x4 = jax.random.normal(k4, (4, 9, 256), dtype=jnp.float32)
    check("plain_row_tiled", x4, budget=8 * 1024, tol=1e-5)

    # 5) Grouped layout with row tiling (forced tiny budget).
    x5 = jax.random.normal(k5, (8, 128, 16), dtype=jnp.float32)
    check("grouped_row_tiled", x5, budget=16 * 1024, tol=1e-5)

    print("KERNEL_OK")
</pallas_src>

<mosaic_0001>
module attributes {stable_mosaic.version = 11 : i64} {
  func.func @_mean_bcast_kernel(%arg0: i32, %arg1: memref<1x128xf32, #tpu.memory_space<vmem>>, %arg2: memref<1x128xf32, #tpu.memory_space<vmem>>) attributes {dimension_semantics = [#tpu.dimension_semantics<parallel>], iteration_bounds = array<i64: 1>, scalar_prefetch = 0 : i64, scratch_operands = 0 : i64, tpu.core_type = #tpu.core_type<tc>, window_params = [{transform_indices = @transform_0, window_bounds = array<i64: 1, 128>}, {transform_indices = @transform_1, window_bounds = array<i64: 1, 128>}]} {
    %c0 = arith.constant 0 : index
    %c0_0 = arith.constant 0 : index
    %0 = vector.load %arg1[%c0, %c0_0] : memref<1x128xf32, #tpu.memory_space<vmem>>, vector<1x128xf32>
    %cst = arith.constant dense<0.000000e+00> : vector<128xf32>
    %1 = vector.multi_reduction <add>, %0, %cst [0] : vector<1x128xf32> to vector<128xf32>
    %2 = vector.shape_cast %1 : vector<128xf32> to vector<1x128xf32>
    %c16_i32 = arith.constant 16 : i32
    %3 = tpu.dynamic_rotate %2 by %c16_i32 dim 1 : vector<1x128xf32>, i32 -> vector<1x128xf32>
    %4 = arith.addf %2, %3 : vector<1x128xf32>
    %c32_i32 = arith.constant 32 : i32
    %5 = tpu.dynamic_rotate %4 by %c32_i32 dim 1 : vector<1x128xf32>, i32 -> vector<1x128xf32>
    %6 = arith.addf %4, %5 : vector<1x128xf32>
    %c64_i32 = arith.constant 64 : i32
    %7 = tpu.dynamic_rotate %6 by %c64_i32 dim 1 : vector<1x128xf32>, i32 -> vector<1x128xf32>
    %8 = arith.addf %6, %7 : vector<1x128xf32>
    %cst_1 = arith.constant 1.250000e-01 : f32
    %9 = vector.broadcast %cst_1 : f32 to vector<1x128xf32>
    %10 = arith.mulf %8, %9 : vector<1x128xf32>
    %c0_2 = arith.constant 0 : index
    %c0_3 = arith.constant 0 : index
    %11 = vector.load %arg2[%c0_2, %c0_3] : memref<1x128xf32, #tpu.memory_space<vmem>>, vector<1x128xf32>
    tpu.vector_store %arg2[%c0_2, %c0_3], %10 {strides = array<i32>} : memref<1x128xf32, #tpu.memory_space<vmem>>, vector<1x128xf32>,
    return
  }
  func.func @transform_0(%arg0: i32) -> (i32, i32) {
    %c0_i32 = arith.constant 0 : i32
    %c0_i32_0 = arith.constant 0 : i32
    return %c0_i32, %arg0 : i32, i32
  }
  func.func @transform_1(%arg0: i32) -> (i32, i32) {
    %c0_i32 = arith.constant 0 : i32
    %c0_i32_0 = arith.constant 0 : i32
    return %c0_i32, %arg0 : i32, i32
  }
}

</mosaic_0001>

<llo_original>
// kernel: tpu_custom_call.1
$region0: #{tpu_custom_call.1}
  #allocation0 [shape = 'u32[]', space=smem, size = 0x4, offset = 0x4, fixed_abs, tag = 'smem constant byte address 0x4 - core index']
  #allocation1 [shape = 'u32[144,128]{1,0:T(1,128)}', space=vmem, size = 0x12000, scoped, tag = 'internal scratch']
  %s0 = inlined_call_operand.hbm [shape: f32[1,128], index: 0, kind: input, shape index: {}]
  %s1 = inlined_call_operand.hbm [shape: f32[1,128], index: 1, kind: output, shape index: {}]
  %s2 = sld [smem:[#allocation0]]
  $region18: #{tpu_custom_call.1} parent=0
    _
  %s4 = ssub.s32 1, %s2
  %s5 = scalar_select 0, %s4, %s2
  $region1: #{tpu_custom_call.1} parent=0
    #allocation2 [shape = 'u8[512]{0}', space=vmem, size = 0x400, scoped, tag = 'input window, operand 0, single buffered']
    #allocation3 [shape = 's32[1]{0}', space=sflag, size = 0x4, scoped, tag = 'scoped memory for tpu_custom_call.1']
    #allocation4 [shape = 's32[1]{0}', space=sflag, size = 0x4, scoped, tag = 'scoped memory for tpu_custom_call.1']
    #allocation5 [shape = 'u8[512]{0}', space=vmem, size = 0x400, scoped, tag = 'output window, operand 0, single buffered']
    %6 = vsyncpa [#allocation3], 0
    %7 = vsyncpa [#allocation4], 0
    // Predicated region
    $region2: #{tpu_custom_call.1} parent=1 // pred_check
      _
    $region3: #{tpu_custom_call.1} parent=1 // pred_check_branch
      %9 = sbr.rel (0) target = $region5
    $region4: #{tpu_custom_call.1} parent=1 // pred_region
      %s11 = ssub.s32 16, 16
      %12 = vsyncadd [#allocation3], %s11
      %s14 = sshll.u32 [#allocation2], 4
      %s15 = int_to_ptr.vmem [resolvable:$true] %s14
      %17 = dma.hbm_to_vmem [thread:$0]  %s0, 16, %s15, [#allocation3]
    $region5: #{tpu_custom_call.1} parent=1 // pred_fallthru
      _
    // Predicated region
    $region6: #{tpu_custom_call.1} parent=1 // pred_check
      _
    $region7: #{tpu_custom_call.1} parent=1 // pred_check_branch
      %19 = sbr.rel (0) target = $region9
    $region8: #{tpu_custom_call.1} parent=1 // pred_region
      %20 = dma.done [#allocation3], 16
    $region9: #{tpu_custom_call.1} parent=1 // pred_fallthru
      _
    %v21 = vld [vmem:[#allocation2] sm:$0x1]
    %v22 = vadd.f32 %v21, 0.0
    %23 = vrot.lane.b32.xlu0 %v22, 16
    %v24 = vpop.permute.xlu0 %23
    %v25 = vadd.f32 %v22, %v24
    %26 = vrot.lane.b32.xlu0 %v25, 32
    %v27 = vpop.permute.xlu0 %26
    %v28 = vadd.f32 %v25, %v27
    %29 = vrot.lane.b32.xlu0 %v28, 64
    %v30 = vpop.permute.xlu0 %29
    %v31 = vadd.f32 %v28, %v30
    %v32 = vmul.f32 %v31, 0.125
    %33 = vst [vmem:[#allocation5] sm:$0x1] %v32
    // Predicated region
    $region10: #{tpu_custom_call.1} parent=1 // pred_check
      _
    $region11: #{tpu_custom_call.1} parent=1 // pred_check_branch
      %35 = sbr.rel (0) target = $region13
    $region12: #{tpu_custom_call.1} parent=1 // pred_region
      %s37 = ssub.s32 16, 16
      %38 = vsyncadd [#allocation4], %s37
      %s40 = sshll.u32 [#allocation5], 4
      %s41 = int_to_ptr.vmem [resolvable:$true] %s40
      %43 = dma.vmem_to_hbm [thread:$0]  %s41, 16, %s1, [#allocation4]
    $region13: #{tpu_custom_call.1} parent=1 // pred_fallthru
      _
    // Predicated region
    $region14: #{tpu_custom_call.1} parent=1 // pred_check
      _
    $region15: #{tpu_custom_call.1} parent=1 // pred_check_branch
      %45 = sbr.rel (0) target = $region17
    $region16: #{tpu_custom_call.1} parent=1 // pred_region
      %46 = dma.done [#allocation4], 16
    $region17: #{tpu_custom_call.1} parent=1 // pred_fallthru
      _
    %47 = vsyncpa [#allocation3], 1
    %48 = vsyncpa [#allocation4], 1

</llo_original>
